<compile_context>
chip_gen: v6e
topology: v6e:2x2x1
jax: 0.10.0
libtpu: 0.0.40
codegen_flags: <defaults>
</compile_context>

<pallas_src>
from functools import partial

import jax
import jax.numpy as jnp
from jax.experimental import pallas as pl
from jax.experimental.pallas import tpu as pltpu


def _group_conv_kernel(x_ref, w_ref, b_ref, o_ref, *, KH, TH, stride_h):
    # x_ref: (Hp, Wp*C)        full padded image, W and C fused on lanes
    # w_ref: (KH, Wp*C, Wo*O)  banded weight matrices (one per kernel row)
    # b_ref: (1, Wo*O)         bias tiled over output columns
    # o_ref: (TH, Wo*O)        one row-tile of outputs, lane dense
    i = pl.program_id(1)                     # which Ho row-tile
    wo_o = o_ref.shape[-1]

    acc = jnp.zeros((TH, wo_o), jnp.float32)
    for kh in range(KH):                     # static unroll, KH small (e.g. 3)
        start = i * (TH * stride_h) + kh
        if stride_h == 1:
            rows = x_ref[pl.ds(start, TH), :]                       # (TH, Wp*C)
        else:
            rows = x_ref[pl.ds(start, TH, stride=stride_h), :]      # (TH, Wp*C)
        acc = acc + jnp.dot(rows, w_ref[kh],
                            preferred_element_type=jnp.float32)

    o_ref[...] = (acc + b_ref[...]).astype(o_ref.dtype)


def _pick_row_tile(ho, cap=64):
    """Largest row-tile TH dividing Ho (multiple of 8 if tiling is needed)."""
    if ho <= cap:
        return ho
    for th in range(cap - cap % 8, 0, -8):
        if ho % th == 0:
            return th
    return ho   # fall back to full extent (always a legal block)


def group_conv2d(x_nchw, weight, bias, *, stride=1, padding=0):
    """x_nchw: (N, C, H, W); weight: (O, C, KH, KW); bias: (O,). Returns NCHW."""
    N, C, H, W = x_nchw.shape
    O, Ci, KH, KW = weight.shape
    assert Ci == C
    assert H == W, "C4 rotation-group averaging requires square spatial input"

    x = x_nchw.astype(jnp.float32)
    # Linearity: average the 4 rotated inputs instead of averaging 4 conv outputs.
    x_avg = (x
             + jnp.rot90(x, 1, axes=(2, 3))
             + jnp.rot90(x, 2, axes=(2, 3))
             + jnp.rot90(x, 3, axes=(2, 3))) * 0.25

    x_nhwc = jnp.transpose(x_avg, (0, 2, 3, 1))              # (N, H, W, C)
    if padding:
        x_nhwc = jnp.pad(x_nhwc, ((0, 0), (padding, padding),
                                  (padding, padding), (0, 0)))
    _, Hp, Wp, _ = x_nhwc.shape
    Ho = (Hp - KH) // stride + 1
    Wo = (Wp - KW) // stride + 1
    WpC, WoO = Wp * C, Wo * O

    # Lane-dense input layout: fuse W and C onto the lane axis.
    x_flat = x_nhwc.reshape(N, Hp, WpC)

    # Banded weight: w_big[kh, w_in*C + c, w_out*O + o] =
    #   weight[o, c, kh, kw]  where w_in == w_out*stride + kw   (else 0)
    wt = jnp.transpose(weight, (2, 3, 1, 0)).astype(jnp.float32)   # (KH,KW,C,O)
    S = jnp.zeros((KW, Wp, Wo), jnp.float32)
    wo_idx = jnp.arange(Wo)
    for kw in range(KW):
        S = S.at[kw, wo_idx * stride + kw, wo_idx].set(1.0)
    w_big = jnp.einsum('kpq,hkco->hpcqo', S, wt,
                       precision=jax.lax.Precision.HIGHEST)
    w_big = w_big.reshape(KH, WpC, WoO)
    b_big = jnp.tile(bias.astype(jnp.float32), Wo)[None, :]        # (1, Wo*O)

    TH = _pick_row_tile(Ho)
    assert Ho % TH == 0

    kern = partial(_group_conv_kernel, KH=KH, TH=TH, stride_h=stride)

    out = pl.pallas_call(
        kern,
        out_shape=jax.ShapeDtypeStruct((N, Ho, WoO), jnp.float32),
        grid=(N, Ho // TH),
        in_specs=[
            # Full padded image per n; block index constant over the row-tile
            # axis, so Pallas skips the re-DMA across inner grid steps.
            pl.BlockSpec((None, Hp, WpC), lambda n, i: (n, 0, 0)),
            pl.BlockSpec((KH, WpC, WoO), lambda n, i: (0, 0, 0)),
            pl.BlockSpec((1, WoO), lambda n, i: (0, 0)),
        ],
        out_specs=pl.BlockSpec((None, TH, WoO), lambda n, i: (n, i, 0)),
        compiler_params=pltpu.CompilerParams(
            dimension_semantics=("parallel", "parallel"),
            vmem_limit_bytes=32 * 1024 * 1024),
    )(x_flat, w_big, b_big)

    # (N, Ho, Wo*O) -> (N, Ho, Wo, O) -> NCHW
    out = out.reshape(N, Ho, Wo, O).transpose(0, 3, 1, 2)
    return out


def _reference(x_nchw, weight, bias, *, stride=1, padding=0):
    """Pure-JAX reference matching the PyTorch module: mean over 4 rotations."""
    dn = jax.lax.conv_dimension_numbers(x_nchw.shape, weight.shape,
                                        ("NCHW", "OIHW", "NCHW"))
    outs = []
    for k in range(4):
        v = jnp.rot90(x_nchw, k=k, axes=(2, 3))
        o = jax.lax.conv_general_dilated(
            v.astype(jnp.float32), weight.astype(jnp.float32),
            window_strides=(stride, stride),
            padding=[(padding, padding), (padding, padding)],
            dimension_numbers=dn)
        outs.append(o + bias.reshape(1, -1, 1, 1))
    return jnp.mean(jnp.stack(outs, axis=0), axis=0)


if __name__ == "__main__":
    key = jax.random.PRNGKey(0)
    k_x, k_w, k_b = jax.random.split(key, 3)

    # Small shapes consistent with the module's forward.
    N, Cin, H, W = 2, 4, 16, 16
    Cout, K = 8, 3
    stride, padding = 1, 1

    x = jax.random.normal(k_x, (N, Cin, H, W), dtype=jnp.float32)
    # Deterministic Conv2d-style init (uniform in +-1/sqrt(fan_in)).
    fan_in = Cin * K * K
    bound = 1.0 / (fan_in ** 0.5)
    weight = jax.random.uniform(k_w, (Cout, Cin, K, K),
                                minval=-bound, maxval=bound, dtype=jnp.float32)
    bias = jax.random.uniform(k_b, (Cout,),
                              minval=-bound, maxval=bound, dtype=jnp.float32)

    out = group_conv2d(x, weight, bias, stride=stride, padding=padding)
    out = jax.block_until_ready(out)

    ref = _reference(x, weight, bias, stride=stride, padding=padding)
    assert out.shape == (N, Cout, H, W), out.shape
    assert jnp.allclose(out, ref, rtol=1e-4, atol=1e-4), \
        float(jnp.max(jnp.abs(out - ref)))

    print("KERNEL_OK")
</pallas_src>

<mosaic_0001>
module attributes {stable_mosaic.version = 11 : i64} {
  func.func @_group_conv_kernel(%arg0: i32, %arg1: i32, %arg2: memref<1x18x72xf32, #tpu.memory_space<vmem>>, %arg3: memref<3x72x128xf32, #tpu.memory_space<vmem>>, %arg4: memref<1x128xf32, #tpu.memory_space<vmem>>, %arg5: memref<1x16x128xf32, #tpu.memory_space<vmem>>) attributes {dimension_semantics = [#tpu.dimension_semantics<parallel>, #tpu.dimension_semantics<parallel>], iteration_bounds = array<i64: 2, 1>, scalar_prefetch = 0 : i64, scratch_operands = 0 : i64, tpu.core_type = #tpu.core_type<tc>, window_params = [{transform_indices = @transform_0, window_bounds = array<i64: 1, 18, 72>}, {pipeline_mode = #tpu.pipeline_mode<synchronous>, transform_indices = @transform_1, window_bounds = array<i64: 3, 72, 128>}, {pipeline_mode = #tpu.pipeline_mode<synchronous>, transform_indices = @transform_2, window_bounds = array<i64: 1, 128>}, {transform_indices = @transform_3, window_bounds = array<i64: 1, 16, 128>}]} {
    %cst = arith.constant 0.000000e+00 : f32
    %0 = vector.broadcast %cst : f32 to vector<16x128xf32>
    %c16_i32 = arith.constant 16 : i32
    %1 = arith.muli %arg1, %c16_i32 : i32
    %c0_i32 = arith.constant 0 : i32
    %2 = arith.addi %1, %c0_i32 : i32
    %c0 = arith.constant 0 : index
    %3 = arith.index_cast %2 : i32 to index
    %c0_0 = arith.constant 0 : index
    %4 = vector.load %arg2[%c0, %3, %c0_0] : memref<1x18x72xf32, #tpu.memory_space<vmem>>, vector<1x16x72xf32>
    %5 = vector.shape_cast %4 : vector<1x16x72xf32> to vector<16x72xf32>
    %c0_1 = arith.constant 0 : index
    %c0_2 = arith.constant 0 : index
    %c0_3 = arith.constant 0 : index
    %6 = vector.load %arg3[%c0_1, %c0_2, %c0_3] : memref<3x72x128xf32, #tpu.memory_space<vmem>>, vector<1x72x128xf32>
    %7 = vector.shape_cast %6 : vector<1x72x128xf32> to vector<72x128xf32>
    %cst_4 = arith.constant dense<0.000000e+00> : vector<16x128xf32>
    %8 = tpu.matmul %5, %7, %cst_4 {dimension_numbers = #tpu.dot_dimension_numbers<[1], [0], [0], [1], [0, 0, 1, 1], [], []>} : vector<16x72xf32>, vector<72x128xf32>, vector<16x128xf32> -> vector<16x128xf32>
    %9 = arith.addf %0, %8 : vector<16x128xf32>
    %c16_i32_5 = arith.constant 16 : i32
    %10 = arith.muli %arg1, %c16_i32_5 : i32
    %c1_i32 = arith.constant 1 : i32
    %11 = arith.addi %10, %c1_i32 : i32
    %c0_6 = arith.constant 0 : index
    %12 = arith.index_cast %11 : i32 to index
    %c0_7 = arith.constant 0 : index
    %13 = vector.load %arg2[%c0_6, %12, %c0_7] : memref<1x18x72xf32, #tpu.memory_space<vmem>>, vector<1x16x72xf32>
    %14 = vector.shape_cast %13 : vector<1x16x72xf32> to vector<16x72xf32>
    %c1 = arith.constant 1 : index
    %c0_8 = arith.constant 0 : index
    %c0_9 = arith.constant 0 : index
    %15 = vector.load %arg3[%c1, %c0_8, %c0_9] : memref<3x72x128xf32, #tpu.memory_space<vmem>>, vector<1x72x128xf32>
    %16 = vector.shape_cast %15 : vector<1x72x128xf32> to vector<72x128xf32>
    %cst_10 = arith.constant dense<0.000000e+00> : vector<16x128xf32>
    %17 = tpu.matmul %14, %16, %cst_10 {dimension_numbers = #tpu.dot_dimension_numbers<[1], [0], [0], [1], [0, 0, 1, 1], [], []>} : vector<16x72xf32>, vector<72x128xf32>, vector<16x128xf32> -> vector<16x128xf32>
    %18 = arith.addf %9, %17 : vector<16x128xf32>
    %c16_i32_11 = arith.constant 16 : i32
    %19 = arith.muli %arg1, %c16_i32_11 : i32
    %c2_i32 = arith.constant 2 : i32
    %20 = arith.addi %19, %c2_i32 : i32
    %c0_12 = arith.constant 0 : index
    %21 = arith.index_cast %20 : i32 to index
    %c0_13 = arith.constant 0 : index
    %22 = vector.load %arg2[%c0_12, %21, %c0_13] : memref<1x18x72xf32, #tpu.memory_space<vmem>>, vector<1x16x72xf32>
    %23 = vector.shape_cast %22 : vector<1x16x72xf32> to vector<16x72xf32>
    %c2 = arith.constant 2 : index
    %c0_14 = arith.constant 0 : index
    %c0_15 = arith.constant 0 : index
    %24 = vector.load %arg3[%c2, %c0_14, %c0_15] : memref<3x72x128xf32, #tpu.memory_space<vmem>>, vector<1x72x128xf32>
    %25 = vector.shape_cast %24 : vector<1x72x128xf32> to vector<72x128xf32>
    %cst_16 = arith.constant dense<0.000000e+00> : vector<16x128xf32>
    %26 = tpu.matmul %23, %25, %cst_16 {dimension_numbers = #tpu.dot_dimension_numbers<[1], [0], [0], [1], [0, 0, 1, 1], [], []>} : vector<16x72xf32>, vector<72x128xf32>, vector<16x128xf32> -> vector<16x128xf32>
    %27 = arith.addf %18, %26 : vector<16x128xf32>
    %c0_17 = arith.constant 0 : index
    %c0_18 = arith.constant 0 : index
    %28 = vector.load %arg4[%c0_17, %c0_18] : memref<1x128xf32, #tpu.memory_space<vmem>>, vector<1x128xf32>
    %29 = vector.broadcast %28 : vector<1x128xf32> to vector<16x128xf32>
    %30 = arith.addf %27, %29 : vector<16x128xf32>
    %c0_19 = arith.constant 0 : index
    %c0_20 = arith.constant 0 : index
    %c0_21 = arith.constant 0 : index
    %31 = vector.load %arg5[%c0_19, %c0_20, %c0_21] : memref<1x16x128xf32, #tpu.memory_space<vmem>>, vector<1x16x128xf32>
    %32 = vector.shape_cast %31 : vector<1x16x128xf32> to vector<16x128xf32>
    %33 = vector.shape_cast %30 : vector<16x128xf32> to vector<1x16x128xf32>
    tpu.vector_store %arg5[%c0_19, %c0_20, %c0_21], %33 {strides = array<i32>} : memref<1x16x128xf32, #tpu.memory_space<vmem>>, vector<1x16x128xf32>,
    return
  }
  func.func @transform_0(%arg0: i32, %arg1: i32) -> (i32, i32, i32) {
    %c0_i32 = arith.constant 0 : i32
    %c0_i32_0 = arith.constant 0 : i32
    %c0_i32_1 = arith.constant 0 : i32
    return %arg0, %c0_i32, %c0_i32_0 : i32, i32, i32
  }
  func.func @transform_1(%arg0: i32, %arg1: i32) -> (i32, i32, i32) {
    %c0_i32 = arith.constant 0 : i32
    %c0_i32_0 = arith.constant 0 : i32
    %c0_i32_1 = arith.constant 0 : i32
    %c0_i32_2 = arith.constant 0 : i32
    return %c0_i32, %c0_i32_0, %c0_i32_1 : i32, i32, i32
  }
  func.func @transform_2(%arg0: i32, %arg1: i32) -> (i32, i32) {
    %c0_i32 = arith.constant 0 : i32
    %c0_i32_0 = arith.constant 0 : i32
    %c0_i32_1 = arith.constant 0 : i32
    return %c0_i32, %c0_i32_0 : i32, i32
  }
  func.func @transform_3(%arg0: i32, %arg1: i32) -> (i32, i32, i32) {
    %c0_i32 = arith.constant 0 : i32
    %c0_i32_0 = arith.constant 0 : i32
    return %arg0, %arg1, %c0_i32 : i32, i32, i32
  }
}

</mosaic_0001>

<llo_original>
// kernel: tpu_custom_call.1
$region0: #{tpu_custom_call.1}
  #allocation0 [shape = 'u32[]', space=smem, size = 0x4, offset = 0x4, fixed_abs, tag = 'smem constant byte address 0x4 - core index']
  #allocation1 [shape = 'u32[144,128]{1,0:T(1,128)}', space=vmem, size = 0x12000, scoped, tag = 'internal scratch']
  %s0 = inlined_call_operand.vmem [shape: f32[2,18,72], index: 0, kind: input, shape index: {}]
  %s1 = inlined_call_operand.hbm [shape: f32[3,72,128], index: 1, kind: input, shape index: {}]
  %s2 = inlined_call_operand.vmem [shape: f32[1,128], index: 2, kind: input, shape index: {}]
  %s3 = inlined_call_operand.hbm [shape: f32[2,16,128], index: 3, kind: output, shape index: {}]
  %s4 = sld [smem:[#allocation0]]
  $region49: #{tpu_custom_call.1} parent=0
    _
  %s6 = ssub.s32 1, %s4
  %s7 = scalar_select 0, %s6, %s4
  $region1: #{tpu_custom_call.1} parent=0
    #allocation2 [shape = 'u8[110592]{0}', space=vmem, size = 0x1b000, scoped, tag = 'input window, operand 1, single buffered']
    #allocation3 [shape = 's32[2]{0}', space=sflag, size = 0x8, scoped, tag = 'scoped memory for tpu_custom_call.1']
    #allocation4 [shape = 's32[2]{0}', space=sflag, size = 0x8, scoped, tag = 'scoped memory for tpu_custom_call.1']
    #allocation5 [shape = 'u8[16384]{0}', space=vmem, size = 0x4000, scoped, tag = 'output window, operand 0']
    %8 = vsyncpa [#allocation3], 0
    %9 = vsyncpa [#allocation4], 0
    %s10 = scalar_lea.sflag [#allocation4], 1
    %11 = vsyncpa %s10, 0
    loop: start=0, step=1, limit=4
    $region2: #{tpu_custom_call.1} parent=1 // loop_pre_header
      _
    $region3: #{tpu_custom_call.1} parent=1 // loop_header
      %s13 = sphi 0, %s17
      %p14 = scmp.ge.s32.totalorder %s13, 4
      %s20 = sphi 0, %s32
      %s21 = sphi 0, %s28
      %s22 = sphi 0, %s20
      %s23 = sphi 0, %s21
      %s24 = sphi 0, %s22
      %s25 = sphi 0, %s23
      %s35 = sphi 0, %s37
      %s38 = sphi 0, %s35
      %s39 = sphi 0, %s38
      %s55 = sphi 0, %s39
      %s59 = sphi 0, %s59
      %s61 = sphi 0, %s59
      %s62 = sphi 0, %s61
      %s76 = sphi 0, %s62
      %s80 = sphi 0, %s80
      %s82 = sphi 0, %s80
      %s83 = sphi 0, %s82
      %s97 = sphi 0, %s83
      %s105 = sphi 0, %s107
      %s108 = sphi 0, %s105
      %s109 = sphi 0, %s108
      %s125 = sphi 0, %s109
    $region4: #{tpu_custom_call.1} parent=1 // loop_header_branch
      %16 = sbr.rel (%p14) target = $region8
    $region5: #{tpu_custom_call.1} parent=1 // loop_body
      %s18 = ssub.s32 %s13, 1
      %s19 = ssub.s32 %s13, 2
      %s26 = sadd.s32 1, %s21
      %p27 = scmp.ge.s32.totalorder %s26, 1
      %s28 = scalar_select %p27, 0, %s26
      %s29 = sadd.s32 1, %s20
      %s30 = scalar_select %p27, %s29, %s20
      %p31 = scmp.ge.s32.totalorder %s30, 2
      %s32 = scalar_select %p31, 0, %s30
      %s33 = ssub.s32 %s20, %s32
      %p34 = scmp.eq.s32.totalorder %s33, 0
      %s36 = sadd.s32 %s35, 1
      %s37 = scalar_select %p34, %s35, %s36
      %p40 = pneg %p34
      %p41 = scmp.eq.s32.totalorder %s13, 1
      %p42 = por %p40, %p41
      %p43 = scmp.ne.s32.totalorder %s35, %s38
      %p44 = scmp.eq.s32.totalorder %s13, 0
      %p45 = por %p43, %p44
      %p46 = scmp.ne.s32.totalorder %s35, %s38
      %p47 = scmp.eq.s32.totalorder %s18, 1
      %p48 = por %p46, %p47
      %p49 = scmp.ne.s32.totalorder %s38, %s39
      %p50 = scmp.eq.s32.totalorder %s18, 0
      %p51 = por %p49, %p50
      %p52 = scmp.ne.s32.totalorder %s38, %s39
      %p53 = scmp.eq.s32.totalorder %s19, 1
      %p54 = por %p52, %p53
      %p56 = scmp.ne.s32.totalorder %s39, %s55
      %p57 = scmp.eq.s32.totalorder %s19, 0
      %p58 = por %p56, %p57
      %s60 = sadd.s32 %s59, 1
      %p63 = scmp.eq.s32.totalorder %s13, 1
      %p64 = scmp.ne.s32.totalorder %s59, %s61
      %p65 = scmp.eq.s32.totalorder %s13, 0
      %p66 = por %p64, %p65
      %p67 = scmp.ne.s32.totalorder %s59, %s61
      %p68 = scmp.eq.s32.totalorder %s18, 1
      %p69 = por %p67, %p68
      %p70 = scmp.ne.s32.totalorder %s61, %s62
      %p71 = scmp.eq.s32.totalorder %s18, 0
      %p72 = por %p70, %p71
      %p73 = scmp.ne.s32.totalorder %s61, %s62
      %p74 = scmp.eq.s32.totalorder %s19, 1
      %p75 = por %p73, %p74
      %p77 = scmp.ne.s32.totalorder %s62, %s76
      %p78 = scmp.eq.s32.totalorder %s19, 0
      %p79 = por %p77, %p78
      %s81 = sadd.s32 %s80, 1
      %p84 = scmp.eq.s32.totalorder %s13, 1
      %p85 = scmp.ne.s32.totalorder %s80, %s82
      %p86 = scmp.eq.s32.totalorder %s13, 0
      %p87 = por %p85, %p86
      %p88 = scmp.ne.s32.totalorder %s80, %s82
      %p89 = scmp.eq.s32.totalorder %s18, 1
      %p90 = por %p88, %p89
      %p91 = scmp.ne.s32.totalorder %s82, %s83
      %p92 = scmp.eq.s32.totalorder %s18, 0
      %p93 = por %p91, %p92
      %p94 = scmp.ne.s32.totalorder %s82, %s83
      %p95 = scmp.eq.s32.totalorder %s19, 1
      %p96 = por %p94, %p95
      %p98 = scmp.ne.s32.totalorder %s83, %s97
      %p99 = scmp.eq.s32.totalorder %s19, 0
      %p100 = por %p98, %p99
      %s101 = ssub.s32 %s20, %s32
      %s102 = ssub.s32 %s21, %s28
      %s103 = sor.u32 %s101, %s102
      %p104 = scmp.eq.s32.totalorder %s103, 0
      %s106 = sadd.s32 %s105, 1
      %s107 = scalar_select %p104, %s105, %s106
      %p110 = pneg %p104
      %p111 = scmp.eq.s32.totalorder %s13, 1
      %p112 = por %p110, %p111
      %p113 = scmp.ne.s32.totalorder %s105, %s108
      %p114 = scmp.eq.s32.totalorder %s13, 0
      %p115 = por %p113, %p114
      %p116 = scmp.ne.s32.totalorder %s105, %s108
      %p117 = scmp.eq.s32.totalorder %s18, 1
      %p118 = por %p116, %p117
      %p119 = scmp.ne.s32.totalorder %s108, %s109
      %p120 = scmp.eq.s32.totalorder %s18, 0
      %p121 = por %p119, %p120
      %p122 = scmp.ne.s32.totalorder %s108, %s109
      %p123 = scmp.eq.s32.totalorder %s19, 1
      %p124 = por %p122, %p123
      %p126 = scmp.ne.s32.totalorder %s109, %s125
      %p127 = scmp.eq.s32.totalorder %s19, 0
      %p128 = por %p126, %p127
      %p129 = scmp.le.s32.totalorder 1, %s13
      %p130 = scmp.lt.s32.totalorder %s13, 3
      %p131 = pnand %p129, %p130
      %p132 = pneg %p131
      // Predicated region
      $region9: #{tpu_custom_call.1} parent=5 // pred_check
        _
      $region10: #{tpu_custom_call.1} parent=5 // pred_check_branch
        %134 = sbr.rel (%p131) target = $region12
      $region11: #{tpu_custom_call.1} parent=5 // pred_region
        %s135 = ssub.s32 %s13, 1
        // Predicated region
        $region13: #{tpu_custom_call.1} parent=11 // pred_check
          %p136 = pneg %p72
        $region14: #{tpu_custom_call.1} parent=11 // pred_check_branch
          %138 = sbr.rel (%p136) target = $region16
        $region15: #{tpu_custom_call.1} parent=11 // pred_region
          %s140 = ssub.s32 3456, 3456
          %141 = vsyncadd [#allocation3], %s140
          %s142 = sshll.u32 [#allocation2], 4
          %s143 = int_to_ptr.vmem [resolvable:$true] %s142
          %148 = dma.hbm_to_vmem [thread:$0]  %s1, 3456, %s143, [#allocation3], 128, 128, 8
        $region16: #{tpu_custom_call.1} parent=11 // pred_fallthru
          _
        // Predicated region
        $region17: #{tpu_custom_call.1} parent=11 // pred_check
          %p149 = pneg %p93
        $region18: #{tpu_custom_call.1} parent=11 // pred_check_branch
          %151 = sbr.rel (%p149) target = $region20
        $region19: #{tpu_custom_call.1} parent=11 // pred_region
          _
        $region20: #{tpu_custom_call.1} parent=11 // pred_fallthru
          _
      $region12: #{tpu_custom_call.1} parent=5 // pred_fallthru
        _
      %p152 = scmp.lt.s32.totalorder %s13, 2
      // Predicated region
      $region21: #{tpu_custom_call.1} parent=5 // pred_check
        %p153 = pneg %p152
      $region22: #{tpu_custom_call.1} parent=5 // pred_check_branch
        %155 = sbr.rel (%p153) target = $region24
      $region23: #{tpu_custom_call.1} parent=5 // pred_region
        // Predicated region
        $region25: #{tpu_custom_call.1} parent=23 // pred_check
          %p156 = pneg %p45
        $region26: #{tpu_custom_call.1} parent=23 // pred_check_branch
          %158 = sbr.rel (%p156) target = $region28
        $region27: #{tpu_custom_call.1} parent=23 // pred_region
          %p159 = scmp.lt.s32.totalorder %s20, 1
          %s160 = scalar_select %p159, %s20, 1
          %s161 = smul.addr %s160, 3
          %s162 = smul.addr %s161, 8
          %s163 = scalar_lea.vmem %s0, %s162
        $region28: #{tpu_custom_call.1} parent=23 // pred_fallthru
          _
      $region24: #{tpu_custom_call.1} parent=5 // pred_fallthru
        _
      %p164 = scmp.le.s32.totalorder 1, %s13
      %p165 = scmp.lt.s32.totalorder %s13, 3
      %p166 = pnand %p164, %p165
      %p167 = pneg %p166
      // Predicated region
      $region29: #{tpu_custom_call.1} parent=5 // pred_check
        _
      $region30: #{tpu_custom_call.1} parent=5 // pred_check_branch
        %169 = sbr.rel (%p166) target = $region32
      $region31: #{tpu_custom_call.1} parent=5 // pred_region
        %s170 = ssub.s32 %s13, 1
        // Predicated region
        $region33: #{tpu_custom_call.1} parent=31 // pred_check
          %p171 = pneg %p72
        $region34: #{tpu_custom_call.1} parent=31 // pred_check_branch
          %173 = sbr.rel (%p171) target = $region36
        $region35: #{tpu_custom_call.1} parent=31 // pred_region
          %174 = dma.done [#allocation3], 3456
        $region36: #{tpu_custom_call.1} parent=31 // pred_fallthru
          _
        %p175 = scmp.lt.s32.totalorder %s22, 1
        %s176 = scalar_select %p175, %s22, 1
        %s177 = smul.addr %s176, 3
        %s178 = smul.addr %s177, 8
        %s179 = scalar_lea.vmem %s0, %s178
        %p180 = pneg %p51
        %p181 = pneg %p48
        %p182 = pneg %p72
        %p183 = pneg %p69
        %p184 = pneg %p93
        %p185 = pneg %p90
        %p186 = pneg %p121
        %p187 = pneg %p118
        %s188 = sand.u32 %s108, 1
        %s189 = scalar_lea.sflag [#allocation4], %s188
        %s190 = sand.u32 %s108, 1
        %s191 = smul.addr %s190, 16
        %s192 = scalar_lea.vmem [#allocation5], %s191
        %p193 = scmp.lt.s32.totalorder %s22, 1
        %s194 = scalar_select %p193, %s22, 1
        %s195 = smul.addr %s194, 3
        %s196 = smul.addr %s195, 8
        %s197 = scalar_lea.vmem %s0, %s196
        %s198 = smul.u32 2, %s23
        %s199 = smul.u32 %s23, 16
        %s200 = scalar_lea.vmem %s197, %s199
        %v201 = vld [vmem:[%s200] sm:$0xff]
        %v202 = vld [vmem:[%s200 + $0x8] sm:$0xff]
        %v203 = vld [vmem:[#allocation2] sm:$0xff]
        %v204 = vld [vmem:[#allocation2 + $0x8] sm:$0xff]
        %v205 = vld [vmem:[#allocation2 + $0x10] sm:$0xff]
        %v206 = vld [vmem:[#allocation2 + $0x18] sm:$0xff]
        %v207 = vld [vmem:[#allocation2 + $0x20] sm:$0xff]
        %v208 = vld [vmem:[#allocation2 + $0x28] sm:$0xff]
        %v209 = vld [vmem:[#allocation2 + $0x30] sm:$0xff]
        %v210 = vld [vmem:[#allocation2 + $0x38] sm:$0xff]
        %v211 = vld [vmem:[#allocation2 + $0x40] sm:$0xff]
        %s212 = sadd.s32 %s199, 1
        %s213 = scalar_lea.vmem %s197, %s212
        %v214 = vld [vmem:[%s213] sm:$0xff]
        %v215 = vld [vmem:[%s213 + $0x8] sm:$0xff]
        %s216 = scalar_lea.vmem [#allocation2], 72
        %v217 = vld [vmem:[%s216] sm:$0xff]
        %v218 = vld [vmem:[%s216 + $0x8] sm:$0xff]
        %v219 = vld [vmem:[%s216 + $0x10] sm:$0xff]
        %v220 = vld [vmem:[%s216 + $0x18] sm:$0xff]
        %v221 = vld [vmem:[%s216 + $0x20] sm:$0xff]
        %v222 = vld [vmem:[%s216 + $0x28] sm:$0xff]
        %v223 = vld [vmem:[%s216 + $0x30] sm:$0xff]
        %v224 = vld [vmem:[%s216 + $0x38] sm:$0xff]
        %v225 = vld [vmem:[%s216 + $0x40] sm:$0xff]
        %vm226 = vcmask 588800
        %v228 = vsel %vm226, %v214, 0
        %v231 = vsel %vm226, %v215, 0
        %233 = vmatprep.subr.mxu0 0.0
        %234 = vmatpush1.msra.mxu0 0.0
        %235 = vmatprep.subr.mxu0 0.0
        %236 = vmatpush1.msra.mxu0 0.0
        %237 = vmatprep.subr.mxu0 0.0
        %238 = vmatpush1.msra.mxu0 0.0
        %239 = vmatprep.subr.mxu0 0.0
        %240 = vmatpush1.msra.mxu0 0.0
        %241 = vmatprep.subr.mxu0 0.0
        %242 = vmatpush1.msra.mxu0 0.0
        %243 = vmatprep.subr.mxu0 0.0
        %244 = vmatpush1.msra.mxu0 0.0
        %245 = vmatprep.subr.mxu0 0.0
        %246 = vmatpush1.msra.mxu0 0.0
        %247 = vmatprep.subr.mxu0 0.0
        %248 = vmatpush1.msra.mxu0 %v225
        %249 = vmatprep.subr.mxu0 0.0
        %250 = vmatpush1.msra.mxu0 %v224
        %251 = vmatprep.subr.mxu0 0.0
        %252 = vmatpush1.msra.mxu0 %v223
        %253 = vmatprep.subr.mxu0 0.0
        %254 = vmatpush1.msra.mxu0 %v222
        %255 = vmatprep.subr.mxu0 0.0
        %256 = vmatpush1.msra.mxu0 %v221
        %257 = vmatprep.subr.mxu0 0.0
        %258 = vmatpush1.msra.mxu0 %v220
        %259 = vmatprep.subr.mxu0 0.0
        %260 = vmatpush1.msra.mxu0 %v219
        %261 = vmatprep.subr.mxu0 0.0
        %262 = vmatpush1.msra.mxu0 %v218
        %263 = vmatprep.subr.mxu0 0.0
        %264 = vmatpush1.msra.mxu0 %v217
        %265 = vmatprep.subr.mxu0 0.0
        %266 = vmatpush2.msra.mxu0 0.0
        %267 = vmatprep.subr.mxu0 0.0
        %268 = vmatpush2.msra.mxu0 0.0
        %269 = vmatprep.subr.mxu0 0.0
        %270 = vmatpush2.msra.mxu0 0.0
        %271 = vmatprep.subr.mxu0 0.0
        %272 = vmatpush2.msra.mxu0 0.0
        %273 = vmatprep.subr.mxu0 0.0
        %274 = vmatpush2.msra.mxu0 0.0
        %275 = vmatprep.subr.mxu0 0.0
        %276 = vmatpush2.msra.mxu0 0.0
        %277 = vmatprep.subr.mxu0 0.0
        %278 = vmatpush2.msra.mxu0 0.0
        %279 = vmatprep.subr.mxu0 0.0
        %280 = vmatpush2.msra.mxu0 0.0
        %281 = vmatprep.subr.mxu0 0.0
        %282 = vmatpush2.msra.mxu0 0.0
        %283 = vmatprep.subr.mxu0 0.0
        %284 = vmatpush2.msra.mxu0 0.0
        %285 = vmatprep.subr.mxu0 0.0
        %286 = vmatpush2.msra.mxu0 0.0
        %287 = vmatprep.subr.mxu0 0.0
        %288 = vmatpush2.msra.mxu0 0.0
        %289 = vmatprep.subr.mxu0 0.0
        %290 = vmatpush2.msra.mxu0 0.0
        %291 = vmatprep.subr.mxu0 0.0
        %292 = vmatpush2.msra.mxu0 0.0
        %293 = vmatprep.subr.mxu0 0.0
        %294 = vmatpush2.msra.mxu0 0.0
        %295 = vmatprep.subr.mxu0 0.0
        %296 = vmatpush2.msra.mxu0 0.0
        %297 = vmatprep.mubr.f32.mxu0 0.0
        %298 = vmatmul.mubr.f32.gmra.mxu0 %v228
        %v299 = vpop.f32.mrf.mxu0
        %v300 = vadd.f32 0.0, %v299
        %v301 = vpop.f32.mrf.mxu0
        %302 = vmatprep.mubr.f32.mxu0 0.0
        %303 = vmatmul.mubr.f32.gmra.mxu0 %v231
        %v304 = vpop.f32.mrf.mxu0
        %v305 = vadd.f32 0.0, %v304
        %v306 = vpop.f32.mrf.mxu0
        %307 = vdwg.mxu0
        %v309 = vsel %vm226, %v201, 0
        %v312 = vsel %vm226, %v202, 0
        %314 = vmatprep.subr.mxu0 0.0
        %315 = vmatpush1.msra.mxu0 0.0
        %316 = vmatprep.subr.mxu0 0.0
        %317 = vmatpush1.msra.mxu0 0.0
        %318 = vmatprep.subr.mxu0 0.0
        %319 = vmatpush1.msra.mxu0 0.0
        %320 = vmatprep.subr.mxu0 0.0
        %321 = vmatpush1.msra.mxu0 0.0
        %322 = vmatprep.subr.mxu0 0.0
        %323 = vmatpush1.msra.mxu0 0.0
        %324 = vmatprep.subr.mxu0 0.0
        %325 = vmatpush1.msra.mxu0 0.0
        %326 = vmatprep.subr.mxu0 0.0
        %327 = vmatpush1.msra.mxu0 0.0
        %328 = vmatprep.subr.mxu0 0.0
        %329 = vmatpush1.msra.mxu0 %v211
        %330 = vmatprep.subr.mxu0 0.0
        %331 = vmatpush1.msra.mxu0 %v210
        %332 = vmatprep.subr.mxu0 0.0
        %333 = vmatpush1.msra.mxu0 %v209
        %334 = vmatprep.subr.mxu0 0.0
        %335 = vmatpush1.msra.mxu0 %v208
        %336 = vmatprep.subr.mxu0 0.0
        %337 = vmatpush1.msra.mxu0 %v207
        %338 = vmatprep.subr.mxu0 0.0
        %339 = vmatpush1.msra.mxu0 %v206
        %340 = vmatprep.subr.mxu0 0.0
        %341 = vmatpush1.msra.mxu0 %v205
        %342 = vmatprep.subr.mxu0 0.0
        %343 = vmatpush1.msra.mxu0 %v204
        %344 = vmatprep.subr.mxu0 0.0
        %345 = vmatpush1.msra.mxu0 %v203
        %346 = vmatprep.subr.mxu0 0.0
        %347 = vmatpush2.msra.mxu0 0.0
        %348 = vmatprep.subr.mxu0 0.0
        %349 = vmatpush2.msra.mxu0 0.0
        %350 = vmatprep.subr.mxu0 0.0
        %351 = vmatpush2.msra.mxu0 0.0
        %352 = vmatprep.subr.mxu0 0.0
        %353 = vmatpush2.msra.mxu0 0.0
        %354 = vmatprep.subr.mxu0 0.0
        %355 = vmatpush2.msra.mxu0 0.0
        %356 = vmatprep.subr.mxu0 0.0
        %357 = vmatpush2.msra.mxu0 0.0
        %358 = vmatprep.subr.mxu0 0.0
        %359 = vmatpush2.msra.mxu0 0.0
        %360 = vmatprep.subr.mxu0 0.0
        %361 = vmatpush2.msra.mxu0 0.0
        %362 = vmatprep.subr.mxu0 0.0
        %363 = vmatpush2.msra.mxu0 0.0
        %364 = vmatprep.subr.mxu0 0.0
        %365 = vmatpush2.msra.mxu0 0.0
        %366 = vmatprep.subr.mxu0 0.0
        %367 = vmatpush2.msra.mxu0 0.0
        %368 = vmatprep.subr.mxu0 0.0
        %369 = vmatpush2.msra.mxu0 0.0
        %370 = vmatprep.subr.mxu0 0.0
        %371 = vmatpush2.msra.mxu0 0.0
        %372 = vmatprep.subr.mxu0 0.0
        %373 = vmatpush2.msra.mxu0 0.0
        %374 = vmatprep.subr.mxu0 0.0
        %375 = vmatpush2.msra.mxu0 0.0
        %376 = vmatprep.subr.mxu0 0.0
        %377 = vmatpush2.msra.mxu0 0.0
        %378 = vmatprep.mubr.f32.mxu0 0.0
        %379 = vmatmul.mubr.f32.gmra.mxu0 %v309
        %v380 = vpop.f32.mrf.mxu0
        %v381 = vadd.f32 %v300, %v380
        %v382 = vpop.f32.mrf.mxu0
        %383 = vmatprep.mubr.f32.mxu0 0.0
        %384 = vmatmul.mubr.f32.gmra.mxu0 %v312
        %v385 = vpop.f32.mrf.mxu0
        %v386 = vadd.f32 %v305, %v385
        %v387 = vpop.f32.mrf.mxu0
        %388 = vdwg.mxu0
        %s389 = sadd.s32 %s199, 2
        %s390 = scalar_lea.vmem %s197, %s389
        %v391 = vld [vmem:[%s390] sm:$0xff]
        %v392 = vld [vmem:[%s390 + $0x8] sm:$0xff]
        %s393 = scalar_lea.vmem [#allocation2], 144
        %v394 = vld [vmem:[%s393] sm:$0xff]
        %v395 = vld [vmem:[%s393 + $0x8] sm:$0xff]
        %v396 = vld [vmem:[%s393 + $0x10] sm:$0xff]
        %v397 = vld [vmem:[%s393 + $0x18] sm:$0xff]
        %v398 = vld [vmem:[%s393 + $0x20] sm:$0xff]
        %v399 = vld [vmem:[%s393 + $0x28] sm:$0xff]
        %v400 = vld [vmem:[%s393 + $0x30] sm:$0xff]
        %v401 = vld [vmem:[%s393 + $0x38] sm:$0xff]
        %v402 = vld [vmem:[%s393 + $0x40] sm:$0xff]
        %v404 = vsel %vm226, %v391, 0
        %v407 = vsel %vm226, %v392, 0
        %409 = vmatprep.subr.mxu0 0.0
        %410 = vmatpush1.msra.mxu0 0.0
        %411 = vmatprep.subr.mxu0 0.0
        %412 = vmatpush1.msra.mxu0 0.0
        %413 = vmatprep.subr.mxu0 0.0
        %414 = vmatpush1.msra.mxu0 0.0
        %415 = vmatprep.subr.mxu0 0.0
        %416 = vmatpush1.msra.mxu0 0.0
        %417 = vmatprep.subr.mxu0 0.0
        %418 = vmatpush1.msra.mxu0 0.0
        %419 = vmatprep.subr.mxu0 0.0
        %420 = vmatpush1.msra.mxu0 0.0
        %421 = vmatprep.subr.mxu0 0.0
        %422 = vmatpush1.msra.mxu0 0.0
        %423 = vmatprep.subr.mxu0 0.0
        %424 = vmatpush1.msra.mxu0 %v402
        %425 = vmatprep.subr.mxu0 0.0
        %426 = vmatpush1.msra.mxu0 %v401
        %427 = vmatprep.subr.mxu0 0.0
        %428 = vmatpush1.msra.mxu0 %v400
        %429 = vmatprep.subr.mxu0 0.0
        %430 = vmatpush1.msra.mxu0 %v399
        %431 = vmatprep.subr.mxu0 0.0
        %432 = vmatpush1.msra.mxu0 %v398
        %433 = vmatprep.subr.mxu0 0.0
        %434 = vmatpush1.msra.mxu0 %v397
        %435 = vmatprep.subr.mxu0 0.0
        %436 = vmatpush1.msra.mxu0 %v396
        %437 = vmatprep.subr.mxu0 0.0
        %438 = vmatpush1.msra.mxu0 %v395
        %439 = vmatprep.subr.mxu0 0.0
        %440 = vmatpush1.msra.mxu0 %v394
        %441 = vmatprep.subr.mxu0 0.0
        %442 = vmatpush2.msra.mxu0 0.0
        %443 = vmatprep.subr.mxu0 0.0
        %444 = vmatpush2.msra.mxu0 0.0
        %445 = vmatprep.subr.mxu0 0.0
        %446 = vmatpush2.msra.mxu0 0.0
        %447 = vmatprep.subr.mxu0 0.0
        %448 = vmatpush2.msra.mxu0 0.0
        %449 = vmatprep.subr.mxu0 0.0
        %450 = vmatpush2.msra.mxu0 0.0
        %451 = vmatprep.subr.mxu0 0.0
        %452 = vmatpush2.msra.mxu0 0.0
        %453 = vmatprep.subr.mxu0 0.0
        %454 = vmatpush2.msra.mxu0 0.0
        %455 = vmatprep.subr.mxu0 0.0
        %456 = vmatpush2.msra.mxu0 0.0
        %457 = vmatprep.subr.mxu0 0.0
        %458 = vmatpush2.msra.mxu0 0.0
        %459 = vmatprep.subr.mxu0 0.0
        %460 = vmatpush2.msra.mxu0 0.0
        %461 = vmatprep.subr.mxu0 0.0
        %462 = vmatpush2.msra.mxu0 0.0
        %463 = vmatprep.subr.mxu0 0.0
        %464 = vmatpush2.msra.mxu0 0.0
        %465 = vmatprep.subr.mxu0 0.0
        %466 = vmatpush2.msra.mxu0 0.0
        %467 = vmatprep.subr.mxu0 0.0
        %468 = vmatpush2.msra.mxu0 0.0
        %469 = vmatprep.subr.mxu0 0.0
        %470 = vmatpush2.msra.mxu0 0.0
        %471 = vmatprep.subr.mxu0 0.0
        %472 = vmatpush2.msra.mxu0 0.0
        %473 = vmatprep.mubr.f32.mxu0 0.0
        %474 = vmatmul.mubr.f32.gmra.mxu0 %v404
        %v475 = vpop.f32.mrf.mxu0
        %v476 = vadd.f32 0.0, %v475
        %v477 = vpop.f32.mrf.mxu0
        %478 = vmatprep.mubr.f32.mxu0 0.0
        %479 = vmatmul.mubr.f32.gmra.mxu0 %v407
        %v480 = vpop.f32.mrf.mxu0
        %v481 = vadd.f32 0.0, %v480
        %v482 = vpop.f32.mrf.mxu0
        %483 = vdwg.mxu0
        %v484 = vadd.f32 %v381, %v476
        %v485 = vadd.f32 %v386, %v481
        %v486 = vld [vmem:[%s2] sm:$0x1]
        %v488 = vlaneseq
        %v489 = vshrl.u32 %v488, 7
        %v490 = vsub.s32 0, %v489
        %v491 = vrot.slane %v486, %v490
        %v493 = vadd.f32 %v484, %v491
        %v494 = vadd.f32 %v485, %v491
        %495 = vst [vmem:[%s192] sm:$0xff] %v493
        %496 = vst [vmem:[%s192 + $0x8] sm:$0xff] %v494
        %s497 = sand.u32 %s108, 1
        %s498 = scalar_lea.sflag [#allocation4], %s497
        %s499 = sand.u32 %s108, 1
        %s500 = smul.addr %s499, 16
        %s501 = scalar_lea.vmem [#allocation5], %s500
        // Predicated region
        $region37: #{tpu_custom_call.1} parent=31 // pred_check
          %p502 = pneg %p118
        $region38: #{tpu_custom_call.1} parent=31 // pred_check_branch
          %504 = sbr.rel (%p502) target = $region40
        $region39: #{tpu_custom_call.1} parent=31 // pred_region
          %s505 = smul.u32 2, %s23
          %s507 = ssub.s32 256, 256
          %508 = vsyncadd %s498, %s507
          %s509 = smul.addr %s22, 2
          %s510 = sadd.s32 %s505, %s509
          %s511 = smul.addr %s510, 128
          %s512 = scalar_lea.hbm %s3, %s511
          %s513 = sshll.u32 %s501, 4
          %s514 = int_to_ptr.vmem [resolvable:$true] %s513
          %519 = dma.vmem_to_hbm [thread:$0]  %s514, 256, %s512, %s498, 128, 128, 8
        $region40: #{tpu_custom_call.1} parent=31 // pred_fallthru
          _
      $region32: #{tpu_custom_call.1} parent=5 // pred_fallthru
        _
      %p520 = scmp.le.s32.totalorder 2, %s13
      // Predicated region
      $region41: #{tpu_custom_call.1} parent=5 // pred_check
        %p521 = pneg %p520
      $region42: #{tpu_custom_call.1} parent=5 // pred_check_branch
        %523 = sbr.rel (%p521) target = $region44
      $region43: #{tpu_custom_call.1} parent=5 // pred_region
        %s524 = ssub.s32 %s13, 2
        // Predicated region
        $region45: #{tpu_custom_call.1} parent=43 // pred_check
          %p525 = pneg %p124
        $region46: #{tpu_custom_call.1} parent=43 // pred_check_branch
          %527 = sbr.rel (%p525) target = $region48
        $region47: #{tpu_custom_call.1} parent=43 // pred_region
          %s528 = sand.u32 %s109, 1
          %s529 = scalar_lea.sflag [#allocation4], %s528
          %s530 = sand.u32 %s109, 1
          %s531 = smul.addr %s530, 16
          %s532 = scalar_lea.vmem [#allocation5], %s531
          %533 = dma.done %s529, 256
        $region48: #{tpu_custom_call.1} parent=43 // pred_fallthru
          _
      $region44: #{tpu_custom_call.1} parent=5 // pred_fallthru
        _
    $region6: #{tpu_custom_call.1} parent=1 // loop_footer
      %s17 = sadd.s32 1, %s13
    $region7: #{tpu_custom_call.1} parent=1 // loop_footer_branch
      %12 = sbr.rel target = $region3
    $region8: #{tpu_custom_call.1} parent=1 // loop_exit
      _
    %534 = vsyncpa [#allocation3], 1
    %s535 = scalar_lea.sflag [#allocation3], 1
    %536 = vsyncpa %s535, 1
    %537 = vsyncpa [#allocation4], 1
    %s538 = scalar_lea.sflag [#allocation4], 1
    %539 = vsyncpa %s538, 1

</llo_original>
